<compile_context>
chip_gen: v6e
topology: v6e:2x2x1
jax: 0.10.0
libtpu: 0.0.40
codegen_flags: <defaults>
</compile_context>

<pallas_src>
import jax
import jax.numpy as jnp
from jax.experimental import pallas as pl
from jax.experimental.pallas import tpu as pltpu


_DEFAULT_VMEM_BYTES = 64 << 20  # conservative default: v7x per-TensorCore VMEM


def _vmem_capacity_bytes():
    """Physical per-core VMEM bytes; conservative default if the query fails."""
    try:
        info = pltpu.get_tpu_info()
        for attr in ("vmem_capacity_bytes", "vmem_size_bytes", "vmem_bytes"):
            v = getattr(info, attr, None)
            if v:
                return int(v)
    except Exception:
        pass
    return _DEFAULT_VMEM_BYTES


def _sublane_multiple(itemsize):
    # Minimum second-minor tile per dtype width: f32/f64:8, bf16/f16:16, 8-bit:32.
    return {8: 8, 4: 8, 2: 16, 1: 32}.get(int(itemsize), 8)


def _round_down(x, m):
    return max(m, (x // m) * m)


def _row_index_map(col_block):
    # Factory avoids the late-binding closure-in-comprehension pitfall.
    return lambda i: (i, col_block)


def _copy_kernel(*refs):
    # refs = (in_0 .. in_{n-1}, out_0 .. out_{n-1}); each input block is already
    # the right column range of x, so the body is a pure VMEM copy.
    n = len(refs) // 2
    for in_ref, out_ref in zip(refs[:n], refs[n:]):
        out_ref[...] = in_ref[...]


def _make_slice_kernel(offsets, sizes):
    # Generic path: static (Python-int) slices along the feature axis of the
    # full-width input tile -> aligned vector loads, unrolled small loop.
    def kernel(x_ref, *out_refs):
        for out_ref, off, sz in zip(out_refs, offsets, sizes):
            out_ref[...] = x_ref[:, off:off + sz]
    return kernel


def split_fork(x, shapes, *, block_rows=512, min_pallas_bytes=1 << 18,
               min_burst_bytes=2048, force_pallas=False):
    """Pallas implementation of SplitFork.forward.

    Args:
      x: jnp.ndarray of shape [B, D] with D == sum of all split sizes.
      shapes: dict {name: [size]} (sizes along dim=1), order preserved.
      block_rows: target batch tile size (rows per grid step), before shrinking.
      min_pallas_bytes: below this total size, return plain XLA slices.
      min_burst_bytes: minimum per-row burst (bytes) for the per-output direct
        DMA path; narrower splits use the contiguous full-width read path.
      force_pallas: always take the Pallas path (used for testing).

    Returns:
      dict {name: jnp.ndarray of shape [B, size]}.
    """
    names = list(shapes.keys())
    sizes = [int(s) for v in shapes.values() for s in v]  # ps.flatten equivalent
    assert len(sizes) == len(names), "each entry must contribute one split size"
    assert x.ndim == 2, "SplitFork Pallas kernel expects a [B, D] input"
    B, D = x.shape
    assert sum(sizes) == D, f"split sizes {sizes} must sum to feature dim {D}"

    offsets = []
    acc = 0
    for sz in sizes:
        offsets.append(acc)
        acc += sz

    itemsize = jnp.dtype(x.dtype).itemsize
    total_bytes = B * D * itemsize

    def xla_split():
        return {n: jax.lax.slice_in_dim(x, off, off + sz, axis=1)
                for n, off, sz in zip(names, offsets, sizes)}

    # XLA bypass: tiny inputs (pallas_call fixed cost dominates) OR sub-128-lane
    # splits (masked partial stores + tiny strided writebacks make even a
    # roofline-speed Pallas copy worse than fused XLA slices).
    if not force_pallas and (total_bytes < min_pallas_bytes or D < 128
                             or min(sizes) < 128):
        return xla_split()

    sub = _sublane_multiple(itemsize)

    # ---- pick the batch tile -------------------------------------------------
    tb = min(block_rows, B)
    # Guarantee >= 2 (ideally 4) grid steps whenever B allows it: grid=(1,)
    # disables both double-buffer overlap of HBM read vs writeback and megacore
    # sharding of the "parallel" axis (2 TCs on v7x).
    if B >= 2 * sub and (force_pallas or total_bytes >= (1 << 16)):
        desired_tiles = 4 if B >= 4 * sub else 2
        tb = min(tb, _round_down(-(-B // desired_tiles), sub))
    if tb < B:
        tb = _round_down(tb, sub)  # full-dim block (tb == B) is always legal

    # Generation-aware VMEM budget: ~70% of physical per-core VMEM
    # (≈45 MiB on v7x's 64 MiB; up to 72 MiB on v5e/v6e's 128 MiB).
    vmem_cap = max(_vmem_capacity_bytes(), 32 << 20)
    vmem_budget = min(int(vmem_cap * 0.70), 72 << 20)

    # Per-step resident ~ double-buffered (input block + output blocks)
    # = 4 * tb * D * itemsize for either path; shrink tb to fit the budget.
    while tb > sub and 4 * tb * D * itemsize > vmem_budget:
        tb = _round_down(tb // 2, sub)
    tb = min(tb, B)

    if not force_pallas and 4 * tb * D * itemsize > vmem_budget:
        # D alone is too wide to stage through VMEM even at the minimum batch
        # tile; leave it to XLA.
        # TODO(synk): add a memory_space=pl.ANY variant issuing chunked
        # HBM->HBM async copies per output to decouple VMEM usage from D.
        return xla_split()

    grid = (pl.cdiv(B, tb),)
    out_shapes = tuple(jax.ShapeDtypeStruct((B, sz), x.dtype) for sz in sizes)
    out_specs = tuple(pl.BlockSpec((tb, sz), _row_index_map(0)) for sz in sizes)

    # Explicit VMEM limit: double-buffered footprint + slack, never above 75%
    # of this generation's physical per-core VMEM.
    vmem_limit = 4 * tb * D * itemsize + (2 << 20)
    vmem_limit = int(min(max(vmem_limit, 16 << 20), int(vmem_cap * 0.75)))
    cparams = pltpu.CompilerParams(
        dimension_semantics=("parallel",),
        vmem_limit_bytes=vmem_limit,
    )

    # Path A: lane-dense (sz % 128 == 0), block-addressable (off % sz == 0) and
    # wide enough per row (>= min_burst_bytes) that a strided per-output HBM
    # read keeps DMA bursts efficient.  Each output gets its own input
    # BlockSpec, so the DMA lands the column range directly in an output-shaped
    # tile and the kernel is a pure ref-to-ref copy.
    # TODO(synk): lane-dense but non-block-addressable offsets (e.g. 256/384/256)
    # could also take this path with element-indexed column BlockSpecs.
    direct = (all(sz % 128 == 0 and off % sz == 0
                  for off, sz in zip(offsets, sizes))
              and min(sizes) * itemsize >= min_burst_bytes)

    if direct:
        in_specs = [pl.BlockSpec((tb, sz), _row_index_map(off // sz))
                    for off, sz in zip(offsets, sizes)]
        outs = pl.pallas_call(
            _copy_kernel,
            out_shape=out_shapes,
            grid=grid,
            in_specs=in_specs,
            out_specs=out_specs,
            compiler_params=cparams,
        )(*([x] * len(sizes)))
    else:
        # Path B: one contiguous full-width (tb, D) input block per step,
        # sliced with static offsets in VMEM.  The vld/vst slice copy sits far
        # below the per-cycle slot roofline, so it hides behind the HBM stream.
        kernel = _make_slice_kernel(tuple(offsets), tuple(sizes))
        in_specs = [pl.BlockSpec((tb, D), _row_index_map(0))]
        outs = pl.pallas_call(
            kernel,
            out_shape=out_shapes,
            grid=grid,
            in_specs=in_specs,
            out_specs=out_specs,
            compiler_params=cparams,
        )(x)

    return dict(zip(names, outs))


if __name__ == "__main__":
    key = jax.random.PRNGKey(0)

    # 1) Lane-dense, block-addressable, wide splits -> direct per-output DMA
    #    path (Path A), multiple batch tiles (grid >= 4).
    shapes_a = {"q": [512], "k": [512]}
    B, D = 64, 1024
    x = jax.random.normal(key, (B, D), dtype=jnp.float32)
    out = split_fork(x, shapes_a, force_pallas=True)
    jax.block_until_ready(out)
    assert out["q"].shape == (B, 512) and out["k"].shape == (B, 512)
    assert jnp.array_equal(out["q"], x[:, :512])
    assert jnp.array_equal(out["k"], x[:, 512:])

    # 2) bf16 input (dtype-aware sublane tiling), narrow 128-wide splits ->
    #    contiguous full-width read path (Path B).
    shapes_bf = {"a": [128], "b": [128]}
    xb = jax.random.normal(jax.random.PRNGKey(1), (48, 256)).astype(jnp.bfloat16)
    outb = split_fork(xb, shapes_bf, force_pallas=True)
    jax.block_until_ready(outb)
    assert outb["a"].shape == (48, 128) and outb["b"].shape == (48, 128)
    assert jnp.array_equal(outb["a"], xb[:, :128])
    assert jnp.array_equal(outb["b"], xb[:, 128:])

    # 3) Tiny, non-lane-aligned splits (original example) forced through
    #    Pallas -> full-dim blocks, sliced path (Path B).
    shapes_b = {"a": [8], "b": [24]}
    x2 = jax.random.normal(jax.random.PRNGKey(0), (2, 32), dtype=jnp.float32)
    out2 = split_fork(x2, shapes_b, force_pallas=True)
    jax.block_until_ready(out2)
    assert out2["a"].shape == (2, 8) and out2["b"].shape == (2, 24)
    assert jnp.array_equal(out2["a"], x2[:, :8])
    assert jnp.array_equal(out2["b"], x2[:, 8:])

    # 4) Default heuristics: sub-128 splits / tiny input -> pure XLA slices.
    out3 = split_fork(x2, shapes_b)
    jax.block_until_ready(out3)
    assert jnp.array_equal(out3["a"], x2[:, :8])
    assert jnp.array_equal(out3["b"], x2[:, 8:])

    # 5) Default heuristics on a larger, lane-dense input -> Pallas path
    #    without force_pallas.
    shapes_c = {"u": [256], "v": [256]}
    x4 = jax.random.normal(jax.random.PRNGKey(2), (256, 512), dtype=jnp.float32)
    out4 = split_fork(x4, shapes_c)
    jax.block_until_ready(out4)
    assert jnp.array_equal(out4["u"], x4[:, :256])
    assert jnp.array_equal(out4["v"], x4[:, 256:])

    print("KERNEL_OK")
</pallas_src>

<mosaic_0001>
module attributes {stable_mosaic.version = 11 : i64} {
  func.func @_copy_kernel(%arg0: i32, %arg1: memref<16x512xf32, #tpu.memory_space<vmem>>, %arg2: memref<16x512xf32, #tpu.memory_space<vmem>>, %arg3: memref<16x512xf32, #tpu.memory_space<vmem>>, %arg4: memref<16x512xf32, #tpu.memory_space<vmem>>) attributes {dimension_semantics = [#tpu.dimension_semantics<parallel>], iteration_bounds = array<i64: 4>, scalar_prefetch = 0 : i64, scratch_operands = 0 : i64, tpu.core_type = #tpu.core_type<tc>, window_params = [{transform_indices = @transform_0, window_bounds = array<i64: 16, 512>}, {transform_indices = @transform_1, window_bounds = array<i64: 16, 512>}, {transform_indices = @transform_2, window_bounds = array<i64: 16, 512>}, {transform_indices = @transform_3, window_bounds = array<i64: 16, 512>}]} {
    %c0 = arith.constant 0 : index
    %c0_0 = arith.constant 0 : index
    %0 = vector.load %arg1[%c0, %c0_0] : memref<16x512xf32, #tpu.memory_space<vmem>>, vector<16x512xf32>
    %c0_1 = arith.constant 0 : index
    %c0_2 = arith.constant 0 : index
    %1 = vector.load %arg3[%c0_1, %c0_2] : memref<16x512xf32, #tpu.memory_space<vmem>>, vector<16x512xf32>
    tpu.vector_store %arg3[%c0_1, %c0_2], %0 {strides = array<i32>} : memref<16x512xf32, #tpu.memory_space<vmem>>, vector<16x512xf32>,
    %c0_3 = arith.constant 0 : index
    %c0_4 = arith.constant 0 : index
    %2 = vector.load %arg2[%c0_3, %c0_4] : memref<16x512xf32, #tpu.memory_space<vmem>>, vector<16x512xf32>
    %c0_5 = arith.constant 0 : index
    %c0_6 = arith.constant 0 : index
    %3 = vector.load %arg4[%c0_5, %c0_6] : memref<16x512xf32, #tpu.memory_space<vmem>>, vector<16x512xf32>
    tpu.vector_store %arg4[%c0_5, %c0_6], %2 {strides = array<i32>} : memref<16x512xf32, #tpu.memory_space<vmem>>, vector<16x512xf32>,
    return
  }
  func.func @transform_0(%arg0: i32) -> (i32, i32) {
    %c0_i32 = arith.constant 0 : i32
    %c0_i32_0 = arith.constant 0 : i32
    return %arg0, %c0_i32 : i32, i32
  }
  func.func @transform_1(%arg0: i32) -> (i32, i32) {
    %c1_i32 = arith.constant 1 : i32
    %c0_i32 = arith.constant 0 : i32
    return %arg0, %c1_i32 : i32, i32
  }
  func.func @transform_2(%arg0: i32) -> (i32, i32) {
    %c0_i32 = arith.constant 0 : i32
    %c0_i32_0 = arith.constant 0 : i32
    return %arg0, %c0_i32 : i32, i32
  }
  func.func @transform_3(%arg0: i32) -> (i32, i32) {
    %c0_i32 = arith.constant 0 : i32
    %c0_i32_0 = arith.constant 0 : i32
    return %arg0, %c0_i32 : i32, i32
  }
}

</mosaic_0001>

<llo_original>
// kernel: tpu_custom_call.1
$region0: #{tpu_custom_call.1}
  #allocation0 [shape = 'u32[]', space=smem, size = 0x4, offset = 0x4, fixed_abs, tag = 'smem constant byte address 0x4 - core index']
  #allocation1 [shape = 'u32[144,128]{1,0:T(1,128)}', space=vmem, size = 0x12000, scoped, tag = 'internal scratch']
  %s0 = inlined_call_operand.hbm [shape: f32[64,1024], index: 0, kind: input, shape index: {}]
  %s1 = inlined_call_operand.hbm [shape: f32[64,1024], index: 1, kind: input, shape index: {}]
  %s2 = inlined_call_operand.hbm [shape: f32[64,512], index: 2, kind: output, shape index: {0}]
  %s3 = inlined_call_operand.hbm [shape: f32[64,512], index: 3, kind: output, shape index: {1}]
  %4 = xla_tuple %s2, %s3
  %s5 = sld [smem:[#allocation0]]
  $region57: #{tpu_custom_call.1} parent=0
    _
  %s7 = ssub.s32 1, %s5
  %s8 = scalar_select 0, %s7, %s5
  $region1: #{tpu_custom_call.1} parent=0
    #allocation2 [shape = 'u8[65536]{0}', space=vmem, size = 0x10000, scoped, tag = 'input window, operand 0']
    #allocation3 [shape = 's32[2]{0}', space=sflag, size = 0x8, scoped, tag = 'scoped memory for tpu_custom_call.1']
    #allocation4 [shape = 's32[2]{0}', space=sflag, size = 0x8, scoped, tag = 'scoped memory for tpu_custom_call.1']
    #allocation5 [shape = 'u8[65536]{0}', space=vmem, size = 0x10000, scoped, tag = 'input window, operand 1']
    #allocation6 [shape = 's32[2]{0}', space=sflag, size = 0x8, scoped, tag = 'scoped memory for tpu_custom_call.1']
    #allocation7 [shape = 'u8[65536]{0}', space=vmem, size = 0x10000, scoped, tag = 'output window, operand 0']
    #allocation8 [shape = 'u8[65536]{0}', space=vmem, size = 0x10000, scoped, tag = 'output window, operand 1']
    #allocation9 [shape = 's32[2]{0}', space=sflag, size = 0x8, scoped, tag = 'scoped memory for tpu_custom_call.1']
    %9 = vsyncpa [#allocation3], 0
    %s10 = scalar_lea.sflag [#allocation3], 1
    %11 = vsyncpa %s10, 0
    %12 = vsyncpa [#allocation6], 0
    %s13 = scalar_lea.sflag [#allocation6], 1
    %14 = vsyncpa %s13, 0
    %15 = vsyncpa [#allocation4], 0
    %s16 = scalar_lea.sflag [#allocation4], 1
    %17 = vsyncpa %s16, 0
    %18 = vsyncpa [#allocation9], 0
    %s19 = scalar_lea.sflag [#allocation9], 1
    %20 = vsyncpa %s19, 0
    loop: start=0, step=1, limit=6
    $region2: #{tpu_custom_call.1} parent=1 // loop_pre_header
      _
    $region3: #{tpu_custom_call.1} parent=1 // loop_header
      %s22 = sphi 0, %s26
      %p23 = scmp.ge.s32.totalorder %s22, 6
      %s32 = sphi 0, %s34
      %s35 = sphi 0, %s32
      %s36 = sphi 0, %s35
      %s52 = sphi 0, %s36
      %s58 = sphi 0, %s60
      %s61 = sphi 0, %s58
      %s62 = sphi 0, %s61
      %s78 = sphi 0, %s62
      %s84 = sphi 0, %s86
      %s87 = sphi 0, %s84
      %s88 = sphi 0, %s87
      %s104 = sphi 0, %s88
      %s110 = sphi 0, %s112
      %s113 = sphi 0, %s110
      %s114 = sphi 0, %s113
      %s130 = sphi 0, %s114
    $region4: #{tpu_custom_call.1} parent=1 // loop_header_branch
      %25 = sbr.rel (%p23) target = $region8
    $region5: #{tpu_custom_call.1} parent=1 // loop_body
      %s27 = ssub.s32 %s22, 1
      %s28 = ssub.s32 %s22, 2
      %s29 = sadd.s32 %s22, 1
      %s30 = ssub.s32 %s22, %s29
      %p31 = scmp.eq.s32.totalorder %s30, 0
      %s33 = sadd.s32 %s32, 1
      %s34 = scalar_select %p31, %s32, %s33
      %p37 = pneg %p31
      %p38 = scmp.eq.s32.totalorder %s22, 3
      %p39 = por %p37, %p38
      %p40 = scmp.ne.s32.totalorder %s32, %s35
      %p41 = scmp.eq.s32.totalorder %s22, 0
      %p42 = por %p40, %p41
      %p43 = scmp.ne.s32.totalorder %s32, %s35
      %p44 = scmp.eq.s32.totalorder %s27, 3
      %p45 = por %p43, %p44
      %p46 = scmp.ne.s32.totalorder %s35, %s36
      %p47 = scmp.eq.s32.totalorder %s27, 0
      %p48 = por %p46, %p47
      %p49 = scmp.ne.s32.totalorder %s35, %s36
      %p50 = scmp.eq.s32.totalorder %s28, 3
      %p51 = por %p49, %p50
      %p53 = scmp.ne.s32.totalorder %s36, %s52
      %p54 = scmp.eq.s32.totalorder %s28, 0
      %p55 = por %p53, %p54
      %s56 = ssub.s32 %s22, %s29
      %p57 = scmp.eq.s32.totalorder %s56, 0
      %s59 = sadd.s32 %s58, 1
      %s60 = scalar_select %p57, %s58, %s59
      %p63 = pneg %p57
      %p64 = scmp.eq.s32.totalorder %s22, 3
      %p65 = por %p63, %p64
      %p66 = scmp.ne.s32.totalorder %s58, %s61
      %p67 = scmp.eq.s32.totalorder %s22, 0
      %p68 = por %p66, %p67
      %p69 = scmp.ne.s32.totalorder %s58, %s61
      %p70 = scmp.eq.s32.totalorder %s27, 3
      %p71 = por %p69, %p70
      %p72 = scmp.ne.s32.totalorder %s61, %s62
      %p73 = scmp.eq.s32.totalorder %s27, 0
      %p74 = por %p72, %p73
      %p75 = scmp.ne.s32.totalorder %s61, %s62
      %p76 = scmp.eq.s32.totalorder %s28, 3
      %p77 = por %p75, %p76
      %p79 = scmp.ne.s32.totalorder %s62, %s78
      %p80 = scmp.eq.s32.totalorder %s28, 0
      %p81 = por %p79, %p80
      %s82 = ssub.s32 %s22, %s29
      %p83 = scmp.eq.s32.totalorder %s82, 0
      %s85 = sadd.s32 %s84, 1
      %s86 = scalar_select %p83, %s84, %s85
      %p89 = pneg %p83
      %p90 = scmp.eq.s32.totalorder %s22, 3
      %p91 = por %p89, %p90
      %p92 = scmp.ne.s32.totalorder %s84, %s87
      %p93 = scmp.eq.s32.totalorder %s22, 0
      %p94 = por %p92, %p93
      %p95 = scmp.ne.s32.totalorder %s84, %s87
      %p96 = scmp.eq.s32.totalorder %s27, 3
      %p97 = por %p95, %p96
      %p98 = scmp.ne.s32.totalorder %s87, %s88
      %p99 = scmp.eq.s32.totalorder %s27, 0
      %p100 = por %p98, %p99
      %p101 = scmp.ne.s32.totalorder %s87, %s88
      %p102 = scmp.eq.s32.totalorder %s28, 3
      %p103 = por %p101, %p102
      %p105 = scmp.ne.s32.totalorder %s88, %s104
      %p106 = scmp.eq.s32.totalorder %s28, 0
      %p107 = por %p105, %p106
      %s108 = ssub.s32 %s22, %s29
      %p109 = scmp.eq.s32.totalorder %s108, 0
      %s111 = sadd.s32 %s110, 1
      %s112 = scalar_select %p109, %s110, %s111
      %p115 = pneg %p109
      %p116 = scmp.eq.s32.totalorder %s22, 3
      %p117 = por %p115, %p116
      %p118 = scmp.ne.s32.totalorder %s110, %s113
      %p119 = scmp.eq.s32.totalorder %s22, 0
      %p120 = por %p118, %p119
      %p121 = scmp.ne.s32.totalorder %s110, %s113
      %p122 = scmp.eq.s32.totalorder %s27, 3
      %p123 = por %p121, %p122
      %p124 = scmp.ne.s32.totalorder %s113, %s114
      %p125 = scmp.eq.s32.totalorder %s27, 0
      %p126 = por %p124, %p125
      %p127 = scmp.ne.s32.totalorder %s113, %s114
      %p128 = scmp.eq.s32.totalorder %s28, 3
      %p129 = por %p127, %p128
      %p131 = scmp.ne.s32.totalorder %s114, %s130
      %p132 = scmp.eq.s32.totalorder %s28, 0
      %p133 = por %p131, %p132
      %p134 = scmp.le.s32.totalorder 1, %s22
      %p135 = scmp.lt.s32.totalorder %s22, 5
      %p136 = pnand %p134, %p135
      %p137 = pneg %p136
      // Predicated region
      $region9: #{tpu_custom_call.1} parent=5 // pred_check
        _
      $region10: #{tpu_custom_call.1} parent=5 // pred_check_branch
        %139 = sbr.rel (%p136) target = $region12
      $region11: #{tpu_custom_call.1} parent=5 // pred_region
        %s140 = ssub.s32 %s22, 1
      $region12: #{tpu_custom_call.1} parent=5 // pred_fallthru
        _
      %p141 = scmp.lt.s32.totalorder %s22, 4
      // Predicated region
      $region13: #{tpu_custom_call.1} parent=5 // pred_check
        %p142 = pneg %p141
      $region14: #{tpu_custom_call.1} parent=5 // pred_check_branch
        %144 = sbr.rel (%p142) target = $region16
      $region15: #{tpu_custom_call.1} parent=5 // pred_region
        // Predicated region
        $region17: #{tpu_custom_call.1} parent=15 // pred_check
          %p145 = pneg %p42
        $region18: #{tpu_custom_call.1} parent=15 // pred_check_branch
          %147 = sbr.rel (%p145) target = $region20
        $region19: #{tpu_custom_call.1} parent=15 // pred_region
          %s148 = sand.u32 %s32, 1
          %s149 = scalar_lea.sflag [#allocation3], %s148
          %s150 = sand.u32 %s32, 1
          %s151 = smul.addr %s150, 64
          %s152 = scalar_lea.vmem [#allocation2], %s151
          %s153 = smul.u32 2, %s22
          %s155 = ssub.s32 1024, 1024
          %156 = vsyncadd %s149, %s155
          %s157 = smul.addr %s153, 8
          %s158 = smul.addr %s157, 128
          %s159 = scalar_lea.hbm %s0, %s158
          %s160 = sshll.u32 %s152, 4
          %s161 = int_to_ptr.vmem [resolvable:$true] %s160
          %166 = dma.hbm_to_vmem [thread:$0]  %s159, 1024, %s161, %s149, 1024, 512, 32
        $region20: #{tpu_custom_call.1} parent=15 // pred_fallthru
          _
        // Predicated region
        $region21: #{tpu_custom_call.1} parent=15 // pred_check
          %p167 = pneg %p68
        $region22: #{tpu_custom_call.1} parent=15 // pred_check_branch
          %169 = sbr.rel (%p167) target = $region24
        $region23: #{tpu_custom_call.1} parent=15 // pred_region
          %s170 = sand.u32 %s58, 1
          %s171 = scalar_lea.sflag [#allocation6], %s170
          %s172 = sand.u32 %s58, 1
          %s173 = smul.addr %s172, 64
          %s174 = scalar_lea.vmem [#allocation5], %s173
          %s175 = smul.u32 2, %s22
          %s177 = ssub.s32 1024, 1024
          %178 = vsyncadd %s171, %s177
          %s179 = smul.addr %s175, 8
          %s180 = sadd.s32 4, %s179
          %s181 = smul.addr %s180, 128
          %s182 = scalar_lea.hbm %s1, %s181
          %s183 = sshll.u32 %s174, 4
          %s184 = int_to_ptr.vmem [resolvable:$true] %s183
          %189 = dma.hbm_to_vmem [thread:$0]  %s182, 1024, %s184, %s171, 1024, 512, 32
        $region24: #{tpu_custom_call.1} parent=15 // pred_fallthru
          _
      $region16: #{tpu_custom_call.1} parent=5 // pred_fallthru
        _
      %p190 = scmp.le.s32.totalorder 1, %s22
      %p191 = scmp.lt.s32.totalorder %s22, 5
      %p192 = pnand %p190, %p191
      %p193 = pneg %p192
      // Predicated region
      $region25: #{tpu_custom_call.1} parent=5 // pred_check
        _
      $region26: #{tpu_custom_call.1} parent=5 // pred_check_branch
        %195 = sbr.rel (%p192) target = $region28
      $region27: #{tpu_custom_call.1} parent=5 // pred_region
        %s196 = ssub.s32 %s22, 1
        %s197 = sand.u32 %s35, 1
        %s198 = scalar_lea.sflag [#allocation3], %s197
        %s199 = sand.u32 %s35, 1
        %s200 = smul.addr %s199, 64
        %s201 = scalar_lea.vmem [#allocation2], %s200
        // Predicated region
        $region29: #{tpu_custom_call.1} parent=27 // pred_check
          %p202 = pneg %p48
        $region30: #{tpu_custom_call.1} parent=27 // pred_check_branch
          %204 = sbr.rel (%p202) target = $region32
        $region31: #{tpu_custom_call.1} parent=27 // pred_region
          %205 = dma.done %s198, 1024
        $region32: #{tpu_custom_call.1} parent=27 // pred_fallthru
          _
        %s206 = sand.u32 %s61, 1
        %s207 = scalar_lea.sflag [#allocation6], %s206
        %s208 = sand.u32 %s61, 1
        %s209 = smul.addr %s208, 64
        %s210 = scalar_lea.vmem [#allocation5], %s209
        // Predicated region
        $region33: #{tpu_custom_call.1} parent=27 // pred_check
          %p211 = pneg %p74
        $region34: #{tpu_custom_call.1} parent=27 // pred_check_branch
          %213 = sbr.rel (%p211) target = $region36
        $region35: #{tpu_custom_call.1} parent=27 // pred_region
          %214 = dma.done %s207, 1024
        $region36: #{tpu_custom_call.1} parent=27 // pred_fallthru
          _
        %s215 = sand.u32 %s35, 1
        %s216 = scalar_lea.sflag [#allocation3], %s215
        %s217 = sand.u32 %s35, 1
        %s218 = smul.addr %s217, 64
        %s219 = scalar_lea.vmem [#allocation2], %s218
        %p220 = pneg %p48
        %p221 = pneg %p45
        %s222 = sand.u32 %s61, 1
        %s223 = scalar_lea.sflag [#allocation6], %s222
        %s224 = sand.u32 %s61, 1
        %s225 = smul.addr %s224, 64
        %s226 = scalar_lea.vmem [#allocation5], %s225
        %p227 = pneg %p74
        %p228 = pneg %p71
        %p229 = pneg %p100
        %p230 = pneg %p97
        %s231 = sand.u32 %s87, 1
        %s232 = scalar_lea.sflag [#allocation4], %s231
        %s233 = sand.u32 %s87, 1
        %s234 = smul.addr %s233, 64
        %s235 = scalar_lea.vmem [#allocation7], %s234
        %p236 = pneg %p126
        %p237 = pneg %p123
        %s238 = sand.u32 %s113, 1
        %s239 = scalar_lea.sflag [#allocation9], %s238
        %s240 = sand.u32 %s113, 1
        %s241 = smul.addr %s240, 64
        %s242 = scalar_lea.vmem [#allocation8], %s241
        %s243 = smul.u32 2, %s27
        %s244 = smul.u32 2, %s27
        %s245 = smul.u32 2, %s27
        %s246 = smul.u32 2, %s27
        %v247 = vld [vmem:[%s201] sm:$0xff]
        %v248 = vld [vmem:[%s201 + $0x8] sm:$0xff]
        %v249 = vld [vmem:[%s201 + $0x10] sm:$0xff]
        %v250 = vld [vmem:[%s201 + $0x18] sm:$0xff]
        %v251 = vld [vmem:[%s201 + $0x20] sm:$0xff]
        %v252 = vld [vmem:[%s201 + $0x28] sm:$0xff]
        %v253 = vld [vmem:[%s201 + $0x30] sm:$0xff]
        %v254 = vld [vmem:[%s201 + $0x38] sm:$0xff]
        %255 = vst [vmem:[%s235] sm:$0xff] %v247
        %256 = vst [vmem:[%s235 + $0x8] sm:$0xff] %v248
        %257 = vst [vmem:[%s235 + $0x10] sm:$0xff] %v249
        %258 = vst [vmem:[%s235 + $0x18] sm:$0xff] %v250
        %259 = vst [vmem:[%s235 + $0x20] sm:$0xff] %v251
        %260 = vst [vmem:[%s235 + $0x28] sm:$0xff] %v252
        %261 = vst [vmem:[%s235 + $0x30] sm:$0xff] %v253
        %262 = vst [vmem:[%s235 + $0x38] sm:$0xff] %v254
        %v263 = vld [vmem:[%s210] sm:$0xff]
        %v264 = vld [vmem:[%s210 + $0x8] sm:$0xff]
        %v265 = vld [vmem:[%s210 + $0x10] sm:$0xff]
        %v266 = vld [vmem:[%s210 + $0x18] sm:$0xff]
        %v267 = vld [vmem:[%s210 + $0x20] sm:$0xff]
        %v268 = vld [vmem:[%s210 + $0x28] sm:$0xff]
        %v269 = vld [vmem:[%s210 + $0x30] sm:$0xff]
        %v270 = vld [vmem:[%s210 + $0x38] sm:$0xff]
        %271 = vst [vmem:[%s242] sm:$0xff] %v263
        %272 = vst [vmem:[%s242 + $0x8] sm:$0xff] %v264
        %273 = vst [vmem:[%s242 + $0x10] sm:$0xff] %v265
        %274 = vst [vmem:[%s242 + $0x18] sm:$0xff] %v266
        %275 = vst [vmem:[%s242 + $0x20] sm:$0xff] %v267
        %276 = vst [vmem:[%s242 + $0x28] sm:$0xff] %v268
        %277 = vst [vmem:[%s242 + $0x30] sm:$0xff] %v269
        %278 = vst [vmem:[%s242 + $0x38] sm:$0xff] %v270
        %s279 = sand.u32 %s87, 1
        %s280 = scalar_lea.sflag [#allocation4], %s279
        %s281 = sand.u32 %s87, 1
        %s282 = smul.addr %s281, 64
        %s283 = scalar_lea.vmem [#allocation7], %s282
        %s284 = sand.u32 %s113, 1
        %s285 = scalar_lea.sflag [#allocation9], %s284
        %s286 = sand.u32 %s113, 1
        %s287 = smul.addr %s286, 64
        %s288 = scalar_lea.vmem [#allocation8], %s287
        // Predicated region
        $region37: #{tpu_custom_call.1} parent=27 // pred_check
          %p289 = pneg %p97
        $region38: #{tpu_custom_call.1} parent=27 // pred_check_branch
          %291 = sbr.rel (%p289) target = $region40
        $region39: #{tpu_custom_call.1} parent=27 // pred_region
          %s292 = smul.u32 2, %s27
          %s294 = ssub.s32 1024, 1024
          %295 = vsyncadd %s280, %s294
          %s296 = smul.addr %s292, 4
          %s297 = smul.addr %s296, 128
          %s298 = scalar_lea.hbm %s2, %s297
          %s299 = sshll.u32 %s283, 4
          %s300 = int_to_ptr.vmem [resolvable:$true] %s299
          %305 = dma.vmem_to_hbm [thread:$0]  %s300, 1024, %s298, %s280, 512, 512, 32
        $region40: #{tpu_custom_call.1} parent=27 // pred_fallthru
          _
        // Predicated region
        $region41: #{tpu_custom_call.1} parent=27 // pred_check
          %p306 = pneg %p123
        $region42: #{tpu_custom_call.1} parent=27 // pred_check_branch
          %308 = sbr.rel (%p306) target = $region44
        $region43: #{tpu_custom_call.1} parent=27 // pred_region
          %s309 = smul.u32 2, %s27
          %s311 = ssub.s32 1024, 1024
          %312 = vsyncadd %s285, %s311
          %s313 = smul.addr %s309, 4
          %s314 = smul.addr %s313, 128
          %s315 = scalar_lea.hbm %s3, %s314
          %s316 = sshll.u32 %s288, 4
          %s317 = int_to_ptr.vmem [resolvable:$true] %s316
          %322 = dma.vmem_to_hbm [thread:$0]  %s317, 1024, %s315, %s285, 512, 512, 32
        $region44: #{tpu_custom_call.1} parent=27 // pred_fallthru
          _
      $region28: #{tpu_custom_call.1} parent=5 // pred_fallthru
        _
      %p323 = scmp.le.s32.totalorder 2, %s22
      // Predicated region
      $region45: #{tpu_custom_call.1} parent=5 // pred_check
        %p324 = pneg %p323
      $region46: #{tpu_custom_call.1} parent=5 // pred_check_branch
        %326 = sbr.rel (%p324) target = $region48
      $region47: #{tpu_custom_call.1} parent=5 // pred_region
        %s327 = ssub.s32 %s22, 2
        // Predicated region
        $region49: #{tpu_custom_call.1} parent=47 // pred_check
          %p328 = pneg %p103
        $region50: #{tpu_custom_call.1} parent=47 // pred_check_branch
          %330 = sbr.rel (%p328) target = $region52
        $region51: #{tpu_custom_call.1} parent=47 // pred_region
          %s331 = sand.u32 %s88, 1
          %s332 = scalar_lea.sflag [#allocation4], %s331
          %s333 = sand.u32 %s88, 1
          %s334 = smul.addr %s333, 64
          %s335 = scalar_lea.vmem [#allocation7], %s334
          %336 = dma.done %s332, 1024
        $region52: #{tpu_custom_call.1} parent=47 // pred_fallthru
          _
        // Predicated region
        $region53: #{tpu_custom_call.1} parent=47 // pred_check
          %p337 = pneg %p129
        $region54: #{tpu_custom_call.1} parent=47 // pred_check_branch
          %339 = sbr.rel (%p337) target = $region56
        $region55: #{tpu_custom_call.1} parent=47 // pred_region
          %s340 = sand.u32 %s114, 1
          %s341 = scalar_lea.sflag [#allocation9], %s340
          %s342 = sand.u32 %s114, 1
          %s343 = smul.addr %s342, 64
          %s344 = scalar_lea.vmem [#allocation8], %s343
          %345 = dma.done %s341, 1024
        $region56: #{tpu_custom_call.1} parent=47 // pred_fallthru
          _
      $region48: #{tpu_custom_call.1} parent=5 // pred_fallthru
        _
    $region6: #{tpu_custom_call.1} parent=1 // loop_footer
      %s26 = sadd.s32 1, %s22
    $region7: #{tpu_custom_call.1} parent=1 // loop_footer_branch
      %21 = sbr.rel target = $region3
    $region8: #{tpu_custom_call.1} parent=1 // loop_exit
      _
    %346 = vsyncpa [#allocation3], 1
    %s347 = scalar_lea.sflag [#allocation3], 1
    %348 = vsyncpa %s347, 1
    %349 = vsyncpa [#allocation6], 1
    %s350 = scalar_lea.sflag [#allocation6], 1
    %351 = vsyncpa %s350, 1
    %352 = vsyncpa [#allocation4], 1
    %s353 = scalar_lea.sflag [#allocation4], 1
    %354 = vsyncpa %s353, 1
    %355 = vsyncpa [#allocation9], 1
    %s356 = scalar_lea.sflag [#allocation9], 1
    %357 = vsyncpa %s356, 1

</llo_original>
